<compile_context>
chip_gen: v5e
topology: v5e:2x2
jax: 0.10.0
libtpu: 0.0.40
codegen_flags: <defaults>
</compile_context>

<pallas_src>
import functools

import jax
import jax.numpy as jnp
from jax.experimental import pallas as pl
from jax.experimental.pallas import tpu as pltpu

_INV_SQRT2 = 0.7071067811865475
_SQRT_2_OVER_PI = 0.7978845608028654


def _round_up(x: int, m: int) -> int:
    return ((x + m - 1) // m) * m


def _gelu_erf(x):
    # PyTorch nn.GELU() default: exact erf formulation (multiply, not divide).
    return 0.5 * x * (1.0 + jax.lax.erf(x * jnp.asarray(_INV_SQRT2, x.dtype)))


def _gelu_tanh(x):
    # torch nn.GELU(approximate="tanh"): tanh lowers to the EUP slot (VALU relief).
    c = jnp.asarray(_SQRT_2_OVER_PI, x.dtype)
    k = jnp.asarray(0.044715, x.dtype)
    return 0.5 * x * (1.0 + jnp.tanh(c * (x + k * x * x * x)))


@functools.lru_cache(maxsize=1)
def _has_wide_mxu() -> bool:
    """True on 256-wide-MXU generations (v6e/v7x) where block-diag zero blocks are free."""
    try:
        kind = jax.devices()[0].device_kind.lower()
    except Exception:
        return True
    if any(g in kind for g in ("v6", "v7")):
        return True
    if any(g in kind for g in ("v2", "v3", "v4", "v5")):
        return False
    return True


def _fused_ac_kernel(*refs, fuse_l2, gelu_fn, act_dtype):
    if fuse_l2:
        (x_ref, w1f_ref, b1f_ref, w2f_ref, b2f_ref, w3f_ref, b3f_ref, out_ref) = refs
    else:
        (x_ref, w1f_ref, b1f_ref, aw2_ref, cw2_ref, b2f_ref, w3f_ref, b3f_ref,
         out_ref) = refs

    wdt = w1f_ref.dtype
    x = x_ref[...].astype(wdt)   # in-kernel cast: no extra HBM pass in the wrapper

    # Layer 1 (actor+critic lane-concatenated): one 2H-wide matmul, one GELU pass.
    pre1 = jnp.dot(x, w1f_ref[...], preferred_element_type=jnp.float32) + b1f_ref[...]
    h1 = gelu_fn(pre1.astype(act_dtype))                                   # (TB, 2H)

    # Layer 2.
    if fuse_l2:
        # Single block-diagonal (2H, 2H) matmul: 256-wide MXU swallows the zero blocks,
        # and the lane slices / concat / extra cast disappear.
        pre2 = (jnp.dot(h1.astype(wdt), w2f_ref[...],
                        preferred_element_type=jnp.float32) + b2f_ref[...])
    else:
        H = aw2_ref.shape[0]
        s2a = jnp.dot(h1[:, :H].astype(wdt), aw2_ref[...],
                      preferred_element_type=jnp.float32)
        s2c = jnp.dot(h1[:, H:].astype(wdt), cw2_ref[...],
                      preferred_element_type=jnp.float32)
        pre2 = jnp.concatenate([s2a, s2c], axis=-1) + b2f_ref[...]
    h2 = gelu_fn(pre2.astype(act_dtype))                                   # (TB, 2H)

    # Layer 3: block-structured matmul -> lane-dense [mean | value | 0-pad] slab.
    out = jnp.dot(h2.astype(wdt), w3f_ref[...],
                  preferred_element_type=jnp.float32) + b3f_ref[...]
    out_ref[...] = out.astype(out_ref.dtype)


def init_params(key, d_state, d_action, n_agents_train, hidden=128):
    """Torch-equivalent init. Weights stored as (in, out); biases as (1, out)."""
    d_out = d_action * n_agents_train
    keys = jax.random.split(key, 12)

    def linear(kw, kb, fan_in, fan_out):
        bound = 1.0 / jnp.sqrt(fan_in)
        w = jax.random.uniform(kw, (fan_in, fan_out), jnp.float32, -bound, bound)
        b = jax.random.uniform(kb, (1, fan_out), jnp.float32, -bound, bound)
        return w, b

    aw1, ab1 = linear(keys[0], keys[1], d_state, hidden)
    aw2, ab2 = linear(keys[2], keys[3], hidden, hidden)
    aw3, ab3 = linear(keys[4], keys[5], hidden, d_out)
    cw1, cb1 = linear(keys[6], keys[7], d_state, hidden)
    cw2, cb2 = linear(keys[8], keys[9], hidden, hidden)
    cw3, cb3 = linear(keys[10], keys[11], hidden, 1)

    # log_action_std exists in the module but is unused in forward(); kept for parity.
    log_action_std = jnp.zeros((d_out,), jnp.float32)

    return {
        "aw1": aw1, "ab1": ab1, "aw2": aw2, "ab2": ab2, "aw3": aw3, "ab3": ab3,
        "cw1": cw1, "cb1": cb1, "cw2": cw2, "cb2": cb2, "cw3": cw3, "cb3": cb3,
        "log_action_std": log_action_std,
    }


def pack_params(p, compute_dtype=jnp.float32):
    """Fuse actor/critic weights for the kernel and pre-cast ONCE to compute_dtype."""
    H = p["aw2"].shape[0]
    d_out = p["aw3"].shape[1]
    d_pad = _round_up(d_out + 1, 128)   # lane-dense output slab width
    cd = compute_dtype

    w1f = jnp.concatenate([p["aw1"], p["cw1"]], axis=1)          # (d_state, 2H)
    b1f = jnp.concatenate([p["ab1"], p["cb1"]], axis=1)          # (1, 2H)   f32
    b2f = jnp.concatenate([p["ab2"], p["cb2"]], axis=1)          # (1, 2H)   f32

    # Block-diagonal layer-2 weight: [aw2 0; 0 cw2]  (used on v6e/v7x).
    w2f = jnp.zeros((2 * H, 2 * H), jnp.float32)
    w2f = w2f.at[:H, :H].set(p["aw2"])
    w2f = w2f.at[H:, H:].set(p["cw2"])

    # Block-structured layer-3: rows 0:H feed cols 0:d_out (actor mean), rows H:2H feed
    # col d_out (critic value); remaining columns are zero padding.
    w3f = jnp.zeros((2 * H, d_pad), jnp.float32)
    w3f = w3f.at[:H, :d_out].set(p["aw3"])
    w3f = w3f.at[H:, d_out].set(p["cw3"][:, 0])
    b3f = jnp.zeros((1, d_pad), jnp.float32)
    b3f = b3f.at[:, :d_out].set(p["ab3"])
    b3f = b3f.at[:, d_out].set(p["cb3"][0, 0])

    return {
        "w1f": w1f.astype(cd), "b1f": b1f,
        "aw2": p["aw2"].astype(cd), "cw2": p["cw2"].astype(cd),
        "w2f": w2f.astype(cd), "b2f": b2f,
        "w3f": w3f.astype(cd), "b3f": b3f,
    }


@functools.partial(
    jax.jit,
    static_argnames=("d_out", "block_b", "gelu_approx", "low_precision_gelu", "fuse_l2"))
def actor_critic_forward(state, packed, *, d_out, block_b=1024,
                         gelu_approx=False, low_precision_gelu=False, fuse_l2=None):
    """state: (B, d_state) f32. Returns (value (B,1) f32, action_mean (B,d_out) f32)."""
    B, d_state = state.shape
    H = packed["w1f"].shape[1] // 2
    d_pad = packed["w3f"].shape[1]
    wdt = packed["w1f"].dtype
    is_bf16 = wdt == jnp.bfloat16

    if fuse_l2 is None:
        fuse_l2 = _has_wide_mxu()

    gelu_fn = _gelu_tanh if gelu_approx else _gelu_erf
    # bf16 GELU (packed vregs) only when explicitly requested and weights are bf16;
    # the default path keeps GELU in f32 (matches torch numerics, proven lowering).
    act_dtype = wdt if (low_precision_gelu and is_bf16) else jnp.float32
    out_dtype = jnp.bfloat16 if is_bf16 else jnp.float32

    # --- Batch tiling: >=2 grid steps for non-trivial B (megacore), minimal padding,
    #     TB a multiple of the dtype's native sublane tile.
    sublane = 16 if is_bf16 else 8
    block_b = max(int(block_b), sublane)
    n_steps = max(2, pl.cdiv(B, block_b)) if B > sublane else 1
    TB = _round_up(pl.cdiv(B, n_steps), sublane)
    B_pad = _round_up(B, TB)
    if B_pad != B:
        state = jnp.pad(state, ((0, B_pad - B), (0, 0)))
    grid = (B_pad // TB,)

    const2d = lambda i: (0, 0)  # weights/biases: VMEM-resident across the batch grid
    in_specs = [
        pl.BlockSpec((TB, d_state), lambda i: (i, 0)),       # state: tiled over batch
        pl.BlockSpec((d_state, 2 * H), const2d),
        pl.BlockSpec((1, 2 * H), const2d),
    ]
    operands = [state, packed["w1f"], packed["b1f"]]
    if fuse_l2:
        in_specs.append(pl.BlockSpec((2 * H, 2 * H), const2d))
        operands.append(packed["w2f"])
        l2_flops = 2 * B_pad * (2 * H) * (2 * H)
        l2_weight_elems = 4 * H * H
    else:
        in_specs += [pl.BlockSpec((H, H), const2d), pl.BlockSpec((H, H), const2d)]
        operands += [packed["aw2"], packed["cw2"]]
        l2_flops = 2 * (2 * B_pad * H * H)
        l2_weight_elems = 2 * H * H
    in_specs += [
        pl.BlockSpec((1, 2 * H), const2d),
        pl.BlockSpec((2 * H, d_pad), const2d),
        pl.BlockSpec((1, d_pad), const2d),
    ]
    operands += [packed["b2f"], packed["w3f"], packed["b3f"]]

    # --- Right-sized VMEM budget (double-buffered x/out tiles + resident weights +
    #     f32 intermediates + slack), floored at 16 MiB, capped well under v7x's 64 MiB.
    w_item = jnp.dtype(wdt).itemsize
    out_item = jnp.dtype(out_dtype).itemsize
    weight_bytes = ((d_state * 2 * H + l2_weight_elems + 2 * H * d_pad) * w_item
                    + (2 * H + 2 * H + d_pad) * 4)
    io_bytes = 2 * TB * (d_state * 4 + d_pad * out_item)
    act_bytes = 6 * TB * 2 * H * 4
    vmem_limit = int(min(48 << 20,
                         max(16 << 20,
                             2 * weight_bytes + io_bytes + act_bytes + (4 << 20))))

    flops = 2 * B_pad * d_state * 2 * H + l2_flops + 2 * B_pad * 2 * H * d_pad
    transcendentals = 4 * B_pad * H           # erf/tanh count (two (B, 2H) GELU passes)
    bytes_accessed = (B_pad * d_state * 4 + weight_bytes + B_pad * d_pad * out_item)

    kernel = functools.partial(_fused_ac_kernel, fuse_l2=fuse_l2,
                               gelu_fn=gelu_fn, act_dtype=act_dtype)

    out = pl.pallas_call(
        kernel,
        out_shape=jax.ShapeDtypeStruct((B_pad, d_pad), out_dtype),
        grid=grid,
        in_specs=in_specs,
        out_specs=pl.BlockSpec((TB, d_pad), lambda i: (i, 0)),
        compiler_params=pltpu.CompilerParams(
            dimension_semantics=("parallel",),   # megacore sharding across batch tiles
            vmem_limit_bytes=vmem_limit,
        ),
        cost_estimate=pl.CostEstimate(
            flops=int(flops),
            transcendentals=int(transcendentals),
            bytes_accessed=int(bytes_accessed),
        ),
    )(*operands)

    action_mean = out[:B, :d_out].astype(jnp.float32)
    value = out[:B, d_out:d_out + 1].astype(jnp.float32)
    return value, action_mean


def _reference_forward(state, p):
    def gelu(x):
        return 0.5 * x * (1.0 + jax.lax.erf(x * _INV_SQRT2))

    h = gelu(state @ p["aw1"] + p["ab1"])
    h = gelu(h @ p["aw2"] + p["ab2"])
    mean = h @ p["aw3"] + p["ab3"]
    v = gelu(state @ p["cw1"] + p["cb1"])
    v = gelu(v @ p["cw2"] + p["cb2"])
    v = v @ p["cw3"] + p["cb3"]
    return v, mean


if __name__ == "__main__":
    # Shapes consistent with the module's forward:
    #   n_agents_train=2, d_state=32, d_action=4 -> action_mean dim = 8
    n_agents_train = 2
    d_state = 32
    d_action = 4
    d_out = d_action * n_agents_train

    key = jax.random.PRNGKey(0)
    k_params, k_state = jax.random.split(key)
    params = init_params(k_params, d_state, d_action, n_agents_train)
    packed_f32 = pack_params(params, jnp.float32)
    packed_bf16 = pack_params(params, jnp.bfloat16)

    batch = 16
    state = jax.random.normal(k_state, (batch, d_state), jnp.float32)
    v_ref, m_ref = _reference_forward(state, params)

    # 1) f32 / exact-erf GELU (torch nn.GELU parity): tight match. grid=(2,) at B=16.
    value, action_mean = actor_critic_forward(state, packed_f32, d_out=d_out)
    jax.block_until_ready((value, action_mean))
    assert value.shape == (batch, 1) and action_mean.shape == (batch, d_out)
    assert jnp.allclose(value, v_ref, atol=1e-5, rtol=1e-5)
    assert jnp.allclose(action_mean, m_ref, atol=1e-5, rtol=1e-5)

    # 2) Ragged batch -> exercises batch padding + multi-step parallel grid.
    v13, m13 = actor_critic_forward(state[:13], packed_f32, d_out=d_out)
    jax.block_until_ready((v13, m13))
    assert v13.shape == (13, 1) and m13.shape == (13, d_out)
    assert jnp.allclose(v13, v_ref[:13], atol=1e-5, rtol=1e-5)
    assert jnp.allclose(m13, m_ref[:13], atol=1e-5, rtol=1e-5)

    # 3) tanh-approximate GELU (transcendental on the EUP slot): small, documented drift.
    v_a, m_a = actor_critic_forward(state, packed_f32, d_out=d_out, gelu_approx=True)
    jax.block_until_ready((v_a, m_a))
    assert jnp.allclose(v_a, v_ref, atol=5e-2)
    assert jnp.allclose(m_a, m_ref, atol=5e-2)

    # 4) bf16 weight/compute path (weights pre-cast once; bf16 output slab): loose tol.
    v_b, m_b = actor_critic_forward(state, packed_bf16, d_out=d_out)
    jax.block_until_ready((v_b, m_b))
    assert v_b.shape == (batch, 1) and m_b.shape == (batch, d_out)
    assert jnp.allclose(v_b, v_ref, atol=1e-1, rtol=1e-1)
    assert jnp.allclose(m_b, m_ref, atol=1e-1, rtol=1e-1)

    print("KERNEL_OK")
</pallas_src>

<mosaic_0001>
module attributes {stable_mosaic.version = 11 : i64} {
  func.func @_fused_ac_kernel(%arg0: i32, %arg1: memref<8x32xf32, #tpu.memory_space<vmem>>, %arg2: memref<32x256xf32, #tpu.memory_space<vmem>>, %arg3: memref<1x256xf32, #tpu.memory_space<vmem>>, %arg4: memref<256x256xf32, #tpu.memory_space<vmem>>, %arg5: memref<1x256xf32, #tpu.memory_space<vmem>>, %arg6: memref<256x128xf32, #tpu.memory_space<vmem>>, %arg7: memref<1x128xf32, #tpu.memory_space<vmem>>, %arg8: memref<8x128xf32, #tpu.memory_space<vmem>>) attributes {dimension_semantics = [#tpu.dimension_semantics<parallel>], iteration_bounds = array<i64: 2>, scalar_prefetch = 0 : i64, scratch_operands = 0 : i64, tpu.core_type = #tpu.core_type<tc>, window_params = [{transform_indices = @transform_0, window_bounds = array<i64: 8, 32>}, {pipeline_mode = #tpu.pipeline_mode<synchronous>, transform_indices = @transform_1, window_bounds = array<i64: 32, 256>}, {pipeline_mode = #tpu.pipeline_mode<synchronous>, transform_indices = @transform_2, window_bounds = array<i64: 1, 256>}, {pipeline_mode = #tpu.pipeline_mode<synchronous>, transform_indices = @transform_3, window_bounds = array<i64: 256, 256>}, {pipeline_mode = #tpu.pipeline_mode<synchronous>, transform_indices = @transform_4, window_bounds = array<i64: 1, 256>}, {pipeline_mode = #tpu.pipeline_mode<synchronous>, transform_indices = @transform_5, window_bounds = array<i64: 256, 128>}, {pipeline_mode = #tpu.pipeline_mode<synchronous>, transform_indices = @transform_6, window_bounds = array<i64: 1, 128>}, {transform_indices = @transform_7, window_bounds = array<i64: 8, 128>}]} {
    %c0 = arith.constant 0 : index
    %c0_0 = arith.constant 0 : index
    %0 = vector.load %arg1[%c0, %c0_0] : memref<8x32xf32, #tpu.memory_space<vmem>>, vector<8x32xf32>
    %c0_1 = arith.constant 0 : index
    %c0_2 = arith.constant 0 : index
    %1 = vector.load %arg2[%c0_1, %c0_2] : memref<32x256xf32, #tpu.memory_space<vmem>>, vector<32x256xf32>
    %cst = arith.constant dense<0.000000e+00> : vector<8x256xf32>
    %2 = tpu.matmul %0, %1, %cst {dimension_numbers = #tpu.dot_dimension_numbers<[1], [0], [0], [1], [0, 0, 1, 1], [], []>} : vector<8x32xf32>, vector<32x256xf32>, vector<8x256xf32> -> vector<8x256xf32>
    %c0_3 = arith.constant 0 : index
    %c0_4 = arith.constant 0 : index
    %3 = vector.load %arg3[%c0_3, %c0_4] : memref<1x256xf32, #tpu.memory_space<vmem>>, vector<1x256xf32>
    %4 = vector.broadcast %3 : vector<1x256xf32> to vector<8x256xf32>
    %5 = arith.addf %2, %4 : vector<8x256xf32>
    %cst_5 = arith.constant 5.000000e-01 : f32
    %6 = vector.broadcast %cst_5 : f32 to vector<8x256xf32>
    %7 = arith.mulf %6, %5 : vector<8x256xf32>
    %cst_6 = arith.constant 0.707106769 : f32
    %8 = vector.broadcast %cst_6 : f32 to vector<8x256xf32>
    %9 = arith.mulf %5, %8 : vector<8x256xf32>
    %10 = math.erf %9 : vector<8x256xf32>
    %cst_7 = arith.constant 1.000000e+00 : f32
    %11 = vector.broadcast %cst_7 : f32 to vector<8x256xf32>
    %12 = arith.addf %11, %10 : vector<8x256xf32>
    %13 = arith.mulf %7, %12 : vector<8x256xf32>
    %c0_8 = arith.constant 0 : index
    %c0_9 = arith.constant 0 : index
    %14 = vector.load %arg4[%c0_8, %c0_9] : memref<256x256xf32, #tpu.memory_space<vmem>>, vector<256x256xf32>
    %cst_10 = arith.constant dense<0.000000e+00> : vector<8x256xf32>
    %15 = tpu.matmul %13, %14, %cst_10 {dimension_numbers = #tpu.dot_dimension_numbers<[1], [0], [0], [1], [0, 0, 1, 1], [], []>} : vector<8x256xf32>, vector<256x256xf32>, vector<8x256xf32> -> vector<8x256xf32>
    %c0_11 = arith.constant 0 : index
    %c0_12 = arith.constant 0 : index
    %16 = vector.load %arg5[%c0_11, %c0_12] : memref<1x256xf32, #tpu.memory_space<vmem>>, vector<1x256xf32>
    %17 = vector.broadcast %16 : vector<1x256xf32> to vector<8x256xf32>
    %18 = arith.addf %15, %17 : vector<8x256xf32>
    %cst_13 = arith.constant 5.000000e-01 : f32
    %19 = vector.broadcast %cst_13 : f32 to vector<8x256xf32>
    %20 = arith.mulf %19, %18 : vector<8x256xf32>
    %cst_14 = arith.constant 0.707106769 : f32
    %21 = vector.broadcast %cst_14 : f32 to vector<8x256xf32>
    %22 = arith.mulf %18, %21 : vector<8x256xf32>
    %23 = math.erf %22 : vector<8x256xf32>
    %cst_15 = arith.constant 1.000000e+00 : f32
    %24 = vector.broadcast %cst_15 : f32 to vector<8x256xf32>
    %25 = arith.addf %24, %23 : vector<8x256xf32>
    %26 = arith.mulf %20, %25 : vector<8x256xf32>
    %c0_16 = arith.constant 0 : index
    %c0_17 = arith.constant 0 : index
    %27 = vector.load %arg6[%c0_16, %c0_17] : memref<256x128xf32, #tpu.memory_space<vmem>>, vector<256x128xf32>
    %cst_18 = arith.constant dense<0.000000e+00> : vector<8x128xf32>
    %28 = tpu.matmul %26, %27, %cst_18 {dimension_numbers = #tpu.dot_dimension_numbers<[1], [0], [0], [1], [0, 0, 1, 1], [], []>} : vector<8x256xf32>, vector<256x128xf32>, vector<8x128xf32> -> vector<8x128xf32>
    %c0_19 = arith.constant 0 : index
    %c0_20 = arith.constant 0 : index
    %29 = vector.load %arg7[%c0_19, %c0_20] : memref<1x128xf32, #tpu.memory_space<vmem>>, vector<1x128xf32>
    %30 = vector.broadcast %29 : vector<1x128xf32> to vector<8x128xf32>
    %31 = arith.addf %28, %30 : vector<8x128xf32>
    %c0_21 = arith.constant 0 : index
    %c0_22 = arith.constant 0 : index
    %32 = vector.load %arg8[%c0_21, %c0_22] : memref<8x128xf32, #tpu.memory_space<vmem>>, vector<8x128xf32>
    tpu.vector_store %arg8[%c0_21, %c0_22], %31 {strides = array<i32>} : memref<8x128xf32, #tpu.memory_space<vmem>>, vector<8x128xf32>,
    return
  }
  func.func @transform_0(%arg0: i32) -> (i32, i32) {
    %c0_i32 = arith.constant 0 : i32
    %c0_i32_0 = arith.constant 0 : i32
    return %arg0, %c0_i32 : i32, i32
  }
  func.func @transform_1(%arg0: i32) -> (i32, i32) {
    %c0_i32 = arith.constant 0 : i32
    %c0_i32_0 = arith.constant 0 : i32
    %c0_i32_1 = arith.constant 0 : i32
    return %c0_i32, %c0_i32_0 : i32, i32
  }
  func.func @transform_2(%arg0: i32) -> (i32, i32) {
    %c0_i32 = arith.constant 0 : i32
    %c0_i32_0 = arith.constant 0 : i32
    %c0_i32_1 = arith.constant 0 : i32
    return %c0_i32, %c0_i32_0 : i32, i32
  }
  func.func @transform_3(%arg0: i32) -> (i32, i32) {
    %c0_i32 = arith.constant 0 : i32
    %c0_i32_0 = arith.constant 0 : i32
    %c0_i32_1 = arith.constant 0 : i32
    return %c0_i32, %c0_i32_0 : i32, i32
  }
  func.func @transform_4(%arg0: i32) -> (i32, i32) {
    %c0_i32 = arith.constant 0 : i32
    %c0_i32_0 = arith.constant 0 : i32
    %c0_i32_1 = arith.constant 0 : i32
    return %c0_i32, %c0_i32_0 : i32, i32
  }
  func.func @transform_5(%arg0: i32) -> (i32, i32) {
    %c0_i32 = arith.constant 0 : i32
    %c0_i32_0 = arith.constant 0 : i32
    %c0_i32_1 = arith.constant 0 : i32
    return %c0_i32, %c0_i32_0 : i32, i32
  }
  func.func @transform_6(%arg0: i32) -> (i32, i32) {
    %c0_i32 = arith.constant 0 : i32
    %c0_i32_0 = arith.constant 0 : i32
    %c0_i32_1 = arith.constant 0 : i32
    return %c0_i32, %c0_i32_0 : i32, i32
  }
  func.func @transform_7(%arg0: i32) -> (i32, i32) {
    %c0_i32 = arith.constant 0 : i32
    %c0_i32_0 = arith.constant 0 : i32
    return %arg0, %c0_i32 : i32, i32
  }
}

</mosaic_0001>

<llo_original>
// kernel: actor_critic_forward.1
$region0: #{actor_critic_forward.1}
  #allocation0 [shape = 'u32[]', space=smem, size = 0x4, offset = 0x4, fixed_abs, tag = 'smem constant byte address 0x4 - core index']
  #allocation1 [shape = 'u32[72,128]{1,0:T(1,128)}', space=vmem, size = 0x9000, scoped, tag = 'internal scratch']
  %s0 = inlined_call_operand.hbm [shape: f32[16,32], index: 0, kind: input, shape index: {}]
  %s1 = inlined_call_operand.hbm [shape: f32[32,256], index: 1, kind: input, shape index: {}]
  %s2 = inlined_call_operand.vmem [shape: f32[1,256], index: 2, kind: input, shape index: {}]
  %s3 = inlined_call_operand.hbm [shape: f32[256,256], index: 3, kind: input, shape index: {}]
  %s4 = inlined_call_operand.vmem [shape: f32[1,256], index: 4, kind: input, shape index: {}]
  %s5 = inlined_call_operand.hbm [shape: f32[256,128], index: 5, kind: input, shape index: {}]
  %s6 = inlined_call_operand.hbm [shape: f32[1,128], index: 6, kind: input, shape index: {}]
  %s7 = inlined_call_operand.vmem [shape: f32[16,128], index: 7, kind: output, shape index: {}]
  %s8 = sld [smem:[#allocation0]]
  $region81: #{actor_critic_forward.1} parent=0
    _
  %s10 = ssub.s32 1, %s8
  %s11 = scalar_select 0, %s10, %s8
  $region1: #{actor_critic_forward.1} parent=0
    #allocation2 [shape = 'u8[8192]{0}', space=vmem, size = 0x2000, scoped, tag = 'input window, operand 0']
    #allocation3 [shape = 's32[2]{0}', space=sflag, size = 0x8, scoped, tag = 'scoped memory for actor_critic_forward.1']
    #allocation4 [shape = 'u8[32768]{0}', space=vmem, size = 0x8000, scoped, tag = 'input window, operand 1, single buffered']
    #allocation5 [shape = 's32[1]{0}', space=sflag, size = 0x4, scoped, tag = 'scoped memory for actor_critic_forward.1']
    #allocation6 [shape = 'u8[262144]{0}', space=vmem, size = 0x40000, scoped, tag = 'input window, operand 3, single buffered']
    #allocation7 [shape = 'u8[131072]{0}', space=vmem, size = 0x20000, scoped, tag = 'input window, operand 5, single buffered']
    #allocation8 [shape = 's32[1]{0}', space=sflag, size = 0x4, scoped, tag = 'scoped memory for actor_critic_forward.1']
    #allocation9 [shape = 'u8[512]{0}', space=vmem, size = 0x400, scoped, tag = 'input window, operand 6, single buffered']
    %12 = vsyncpa [#allocation3], 0
    %s13 = scalar_lea.sflag [#allocation3], 1
    %14 = vsyncpa %s13, 0
    %15 = vsyncpa [#allocation5], 0
    %16 = vsyncpa [#allocation8], 0
    loop: start=0, step=1, limit=4
    $region2: #{actor_critic_forward.1} parent=1 // loop_pre_header
      _
    $region3: #{actor_critic_forward.1} parent=1 // loop_header
      %s18 = sphi 0, %s22
      %p19 = scmp.ge.s32.totalorder %s18, 4
      %s28 = sphi 0, %s30
      %s31 = sphi 0, %s28
      %s32 = sphi 0, %s31
      %s48 = sphi 0, %s32
      %s52 = sphi 0, %s52
      %s54 = sphi 0, %s52
      %s55 = sphi 0, %s54
      %s69 = sphi 0, %s55
      %s73 = sphi 0, %s73
      %s75 = sphi 0, %s73
      %s76 = sphi 0, %s75
      %s90 = sphi 0, %s76
      %s94 = sphi 0, %s94
      %s96 = sphi 0, %s94
      %s97 = sphi 0, %s96
      %s111 = sphi 0, %s97
      %s115 = sphi 0, %s115
      %s117 = sphi 0, %s115
      %s118 = sphi 0, %s117
      %s132 = sphi 0, %s118
      %s136 = sphi 0, %s136
      %s138 = sphi 0, %s136
      %s139 = sphi 0, %s138
      %s153 = sphi 0, %s139
      %s157 = sphi 0, %s157
      %s159 = sphi 0, %s157
      %s160 = sphi 0, %s159
      %s174 = sphi 0, %s160
      %s180 = sphi 0, %s182
      %s183 = sphi 0, %s180
      %s184 = sphi 0, %s183
      %s200 = sphi 0, %s184
    $region4: #{actor_critic_forward.1} parent=1 // loop_header_branch
      %21 = sbr.rel (%p19) target = $region8
    $region5: #{actor_critic_forward.1} parent=1 // loop_body
      %s23 = ssub.s32 %s18, 1
      %s24 = ssub.s32 %s18, 2
      %s25 = sadd.s32 %s18, 1
      %s26 = ssub.s32 %s18, %s25
      %p27 = scmp.eq.s32.totalorder %s26, 0
      %s29 = sadd.s32 %s28, 1
      %s30 = scalar_select %p27, %s28, %s29
      %p33 = pneg %p27
      %p34 = scmp.eq.s32.totalorder %s18, 1
      %p35 = por %p33, %p34
      %p36 = scmp.ne.s32.totalorder %s28, %s31
      %p37 = scmp.eq.s32.totalorder %s18, 0
      %p38 = por %p36, %p37
      %p39 = scmp.ne.s32.totalorder %s28, %s31
      %p40 = scmp.eq.s32.totalorder %s23, 1
      %p41 = por %p39, %p40
      %p42 = scmp.ne.s32.totalorder %s31, %s32
      %p43 = scmp.eq.s32.totalorder %s23, 0
      %p44 = por %p42, %p43
      %p45 = scmp.ne.s32.totalorder %s31, %s32
      %p46 = scmp.eq.s32.totalorder %s24, 1
      %p47 = por %p45, %p46
      %p49 = scmp.ne.s32.totalorder %s32, %s48
      %p50 = scmp.eq.s32.totalorder %s24, 0
      %p51 = por %p49, %p50
      %s53 = sadd.s32 %s52, 1
      %p56 = scmp.eq.s32.totalorder %s18, 1
      %p57 = scmp.ne.s32.totalorder %s52, %s54
      %p58 = scmp.eq.s32.totalorder %s18, 0
      %p59 = por %p57, %p58
      %p60 = scmp.ne.s32.totalorder %s52, %s54
      %p61 = scmp.eq.s32.totalorder %s23, 1
      %p62 = por %p60, %p61
      %p63 = scmp.ne.s32.totalorder %s54, %s55
      %p64 = scmp.eq.s32.totalorder %s23, 0
      %p65 = por %p63, %p64
      %p66 = scmp.ne.s32.totalorder %s54, %s55
      %p67 = scmp.eq.s32.totalorder %s24, 1
      %p68 = por %p66, %p67
      %p70 = scmp.ne.s32.totalorder %s55, %s69
      %p71 = scmp.eq.s32.totalorder %s24, 0
      %p72 = por %p70, %p71
      %s74 = sadd.s32 %s73, 1
      %p77 = scmp.eq.s32.totalorder %s18, 1
      %p78 = scmp.ne.s32.totalorder %s73, %s75
      %p79 = scmp.eq.s32.totalorder %s18, 0
      %p80 = por %p78, %p79
      %p81 = scmp.ne.s32.totalorder %s73, %s75
      %p82 = scmp.eq.s32.totalorder %s23, 1
      %p83 = por %p81, %p82
      %p84 = scmp.ne.s32.totalorder %s75, %s76
      %p85 = scmp.eq.s32.totalorder %s23, 0
      %p86 = por %p84, %p85
      %p87 = scmp.ne.s32.totalorder %s75, %s76
      %p88 = scmp.eq.s32.totalorder %s24, 1
      %p89 = por %p87, %p88
      %p91 = scmp.ne.s32.totalorder %s76, %s90
      %p92 = scmp.eq.s32.totalorder %s24, 0
      %p93 = por %p91, %p92
      %s95 = sadd.s32 %s94, 1
      %p98 = scmp.eq.s32.totalorder %s18, 1
      %p99 = scmp.ne.s32.totalorder %s94, %s96
      %p100 = scmp.eq.s32.totalorder %s18, 0
      %p101 = por %p99, %p100
      %p102 = scmp.ne.s32.totalorder %s94, %s96
      %p103 = scmp.eq.s32.totalorder %s23, 1
      %p104 = por %p102, %p103
      %p105 = scmp.ne.s32.totalorder %s96, %s97
      %p106 = scmp.eq.s32.totalorder %s23, 0
      %p107 = por %p105, %p106
      %p108 = scmp.ne.s32.totalorder %s96, %s97
      %p109 = scmp.eq.s32.totalorder %s24, 1
      %p110 = por %p108, %p109
      %p112 = scmp.ne.s32.totalorder %s97, %s111
      %p113 = scmp.eq.s32.totalorder %s24, 0
      %p114 = por %p112, %p113
      %s116 = sadd.s32 %s115, 1
      %p119 = scmp.eq.s32.totalorder %s18, 1
      %p120 = scmp.ne.s32.totalorder %s115, %s117
      %p121 = scmp.eq.s32.totalorder %s18, 0
      %p122 = por %p120, %p121
      %p123 = scmp.ne.s32.totalorder %s115, %s117
      %p124 = scmp.eq.s32.totalorder %s23, 1
      %p125 = por %p123, %p124
      %p126 = scmp.ne.s32.totalorder %s117, %s118
      %p127 = scmp.eq.s32.totalorder %s23, 0
      %p128 = por %p126, %p127
      %p129 = scmp.ne.s32.totalorder %s117, %s118
      %p130 = scmp.eq.s32.totalorder %s24, 1
      %p131 = por %p129, %p130
      %p133 = scmp.ne.s32.totalorder %s118, %s132
      %p134 = scmp.eq.s32.totalorder %s24, 0
      %p135 = por %p133, %p134
      %s137 = sadd.s32 %s136, 1
      %p140 = scmp.eq.s32.totalorder %s18, 1
      %p141 = scmp.ne.s32.totalorder %s136, %s138
      %p142 = scmp.eq.s32.totalorder %s18, 0
      %p143 = por %p141, %p142
      %p144 = scmp.ne.s32.totalorder %s136, %s138
      %p145 = scmp.eq.s32.totalorder %s23, 1
      %p146 = por %p144, %p145
      %p147 = scmp.ne.s32.totalorder %s138, %s139
      %p148 = scmp.eq.s32.totalorder %s23, 0
      %p149 = por %p147, %p148
      %p150 = scmp.ne.s32.totalorder %s138, %s139
      %p151 = scmp.eq.s32.totalorder %s24, 1
      %p152 = por %p150, %p151
      %p154 = scmp.ne.s32.totalorder %s139, %s153
      %p155 = scmp.eq.s32.totalorder %s24, 0
      %p156 = por %p154, %p155
      %s158 = sadd.s32 %s157, 1
      %p161 = scmp.eq.s32.totalorder %s18, 1
      %p162 = scmp.ne.s32.totalorder %s157, %s159
      %p163 = scmp.eq.s32.totalorder %s18, 0
      %p164 = por %p162, %p163
      %p165 = scmp.ne.s32.totalorder %s157, %s159
      %p166 = scmp.eq.s32.totalorder %s23, 1
      %p167 = por %p165, %p166
      %p168 = scmp.ne.s32.totalorder %s159, %s160
      %p169 = scmp.eq.s32.totalorder %s23, 0
      %p170 = por %p168, %p169
      %p171 = scmp.ne.s32.totalorder %s159, %s160
      %p172 = scmp.eq.s32.totalorder %s24, 1
      %p173 = por %p171, %p172
      %p175 = scmp.ne.s32.totalorder %s160, %s174
      %p176 = scmp.eq.s32.totalorder %s24, 0
      %p177 = por %p175, %p176
      %s178 = ssub.s32 %s18, %s25
      %p179 = scmp.eq.s32.totalorder %s178, 0
      %s181 = sadd.s32 %s180, 1
      %s182 = scalar_select %p179, %s180, %s181
      %p185 = pneg %p179
      %p186 = scmp.eq.s32.totalorder %s18, 1
      %p187 = por %p185, %p186
      %p188 = scmp.ne.s32.totalorder %s180, %s183
      %p189 = scmp.eq.s32.totalorder %s18, 0
      %p190 = por %p188, %p189
      %p191 = scmp.ne.s32.totalorder %s180, %s183
      %p192 = scmp.eq.s32.totalorder %s23, 1
      %p193 = por %p191, %p192
      %p194 = scmp.ne.s32.totalorder %s183, %s184
      %p195 = scmp.eq.s32.totalorder %s23, 0
      %p196 = por %p194, %p195
      %p197 = scmp.ne.s32.totalorder %s183, %s184
      %p198 = scmp.eq.s32.totalorder %s24, 1
      %p199 = por %p197, %p198
      %p201 = scmp.ne.s32.totalorder %s184, %s200
      %p202 = scmp.eq.s32.totalorder %s24, 0
      %p203 = por %p201, %p202
      %p204 = scmp.le.s32.totalorder 1, %s18
      %p205 = scmp.lt.s32.totalorder %s18, 3
      %p206 = pnand %p204, %p205
      %p207 = pneg %p206
      // Predicated region
      $region9: #{actor_critic_forward.1} parent=5 // pred_check
        _
      $region10: #{actor_critic_forward.1} parent=5 // pred_check_branch
        %209 = sbr.rel (%p206) target = $region12
      $region11: #{actor_critic_forward.1} parent=5 // pred_region
        %s210 = ssub.s32 %s18, 1
        // Predicated region
        $region13: #{actor_critic_forward.1} parent=11 // pred_check
          %p211 = pneg %p65
        $region14: #{actor_critic_forward.1} parent=11 // pred_check_branch
          %213 = sbr.rel (%p211) target = $region16
        $region15: #{actor_critic_forward.1} parent=11 // pred_region
          %215 = vsyncadd [#allocation5], 0
          %s216 = sshll.u32 %s1, 4
          %s217 = int_to_ptr.hbm [resolvable:$true] %s216
          %s218 = sshll.u32 [#allocation4], 4
          %s219 = int_to_ptr.vmem [resolvable:$true] %s218
          %224 = dma.hbm_to_vmem [thread:$0]  %s217, 1024, %s219, [#allocation5], 256, 256, 16
        $region16: #{actor_critic_forward.1} parent=11 // pred_fallthru
          _
        // Predicated region
        $region17: #{actor_critic_forward.1} parent=11 // pred_check
          %p225 = pneg %p86
        $region18: #{actor_critic_forward.1} parent=11 // pred_check_branch
          %227 = sbr.rel (%p225) target = $region20
        $region19: #{actor_critic_forward.1} parent=11 // pred_region
          _
        $region20: #{actor_critic_forward.1} parent=11 // pred_fallthru
          _
        // Predicated region
        $region21: #{actor_critic_forward.1} parent=11 // pred_check
          %p228 = pneg %p107
        $region22: #{actor_critic_forward.1} parent=11 // pred_check_branch
          %230 = sbr.rel (%p228) target = $region24
        $region23: #{actor_critic_forward.1} parent=11 // pred_region
          %232 = vsyncadd [#allocation5], 0
          %s233 = sshll.u32 %s3, 4
          %s234 = int_to_ptr.hbm [resolvable:$true] %s233
          %s235 = sshll.u32 [#allocation6], 4
          %s236 = int_to_ptr.vmem [resolvable:$true] %s235
          %241 = dma.hbm_to_vmem [thread:$0]  %s234, 8192, %s236, [#allocation5], 256, 256, 16
        $region24: #{actor_critic_forward.1} parent=11 // pred_fallthru
          _
        // Predicated region
        $region25: #{actor_critic_forward.1} parent=11 // pred_check
          %p242 = pneg %p128
        $region26: #{actor_critic_forward.1} parent=11 // pred_check_branch
          %244 = sbr.rel (%p242) target = $region28
        $region27: #{actor_critic_forward.1} parent=11 // pred_region
          _
        $region28: #{actor_critic_forward.1} parent=11 // pred_fallthru
          _
        // Predicated region
        $region29: #{actor_critic_forward.1} parent=11 // pred_check
          %p245 = pneg %p149
        $region30: #{actor_critic_forward.1} parent=11 // pred_check_branch
          %247 = sbr.rel (%p245) target = $region32
        $region31: #{actor_critic_forward.1} parent=11 // pred_region
          %249 = vsyncadd [#allocation8], 0
          %s250 = sshll.u32 %s5, 4
          %s251 = int_to_ptr.hbm [resolvable:$true] %s250
          %s252 = sshll.u32 [#allocation7], 4
          %s253 = int_to_ptr.vmem [resolvable:$true] %s252
          %258 = dma.hbm_to_vmem [thread:$0]  %s251, 4096, %s253, [#allocation8], 128, 128, 8
        $region32: #{actor_critic_forward.1} parent=11 // pred_fallthru
          _
        // Predicated region
        $region33: #{actor_critic_forward.1} parent=11 // pred_check
          %p259 = pneg %p170
        $region34: #{actor_critic_forward.1} parent=11 // pred_check_branch
          %261 = sbr.rel (%p259) target = $region36
        $region35: #{actor_critic_forward.1} parent=11 // pred_region
          %263 = vsyncadd [#allocation8], 0
          %s265 = sshll.u32 %s6, 4
          %s266 = int_to_ptr.hbm [resolvable:$true] %s265
          %s267 = sshll.u32 [#allocation9], 4
          %s268 = int_to_ptr.vmem [resolvable:$true] %s267
          %270 = dma.hbm_to_vmem [thread:$0]  %s266, 16, %s268, [#allocation8]
        $region36: #{actor_critic_forward.1} parent=11 // pred_fallthru
          _
      $region12: #{actor_critic_forward.1} parent=5 // pred_fallthru
        _
      %p271 = scmp.lt.s32.totalorder %s18, 2
      // Predicated region
      $region37: #{actor_critic_forward.1} parent=5 // pred_check
        %p272 = pneg %p271
      $region38: #{actor_critic_forward.1} parent=5 // pred_check_branch
        %274 = sbr.rel (%p272) target = $region40
      $region39: #{actor_critic_forward.1} parent=5 // pred_region
        // Predicated region
        $region41: #{actor_critic_forward.1} parent=39 // pred_check
          %p275 = pneg %p38
        $region42: #{actor_critic_forward.1} parent=39 // pred_check_branch
          %277 = sbr.rel (%p275) target = $region44
        $region43: #{actor_critic_forward.1} parent=39 // pred_region
          %s278 = sand.u32 %s28, 1
          %s279 = scalar_lea.sflag [#allocation3], %s278
          %s280 = sand.u32 %s28, 1
          %s281 = smul.addr %s280, 8
          %s282 = scalar_lea.vmem [#allocation2], %s281
          %284 = vsyncadd %s279, 0
          %s285 = smul.addr %s18, 8
          %s286 = scalar_lea.hbm %s0, %s285
          %s288 = sshll.u32 %s286, 4
          %s289 = int_to_ptr.hbm [resolvable:$true] %s288
          %s290 = sshll.u32 %s282, 4
          %s291 = int_to_ptr.vmem [resolvable:$true] %s290
          %293 = dma.hbm_to_vmem [thread:$0]  %s289, 128, %s291, %s279
        $region44: #{actor_critic_forward.1} parent=39 // pred_fallthru
          _
      $region40: #{actor_critic_forward.1} parent=5 // pred_fallthru
        _
      %p294 = scmp.le.s32.totalorder 1, %s18
      %p295 = scmp.lt.s32.totalorder %s18, 3
      %p296 = pnand %p294, %p295
      %p297 = pneg %p296
      // Predicated region
      $region45: #{actor_critic_forward.1} parent=5 // pred_check
        _
      $region46: #{actor_critic_forward.1} parent=5 // pred_check_branch
        %299 = sbr.rel (%p296) target = $region48
      $region47: #{actor_critic_forward.1} parent=5 // pred_region
        %s300 = ssub.s32 %s18, 1
        %s301 = sand.u32 %s31, 1
        %s302 = scalar_lea.sflag [#allocation3], %s301
        %s303 = sand.u32 %s31, 1
        %s304 = smul.addr %s303, 8
        %s305 = scalar_lea.vmem [#allocation2], %s304
        // Predicated region
        $region49: #{actor_critic_forward.1} parent=47 // pred_check
          %p306 = pneg %p44
        $region50: #{actor_critic_forward.1} parent=47 // pred_check_branch
          %308 = sbr.rel (%p306) target = $region52
        $region51: #{actor_critic_forward.1} parent=47 // pred_region
          %310 = dma.done %s302, 128
        $region52: #{actor_critic_forward.1} parent=47 // pred_fallthru
          _
        // Predicated region
        $region53: #{actor_critic_forward.1} parent=47 // pred_check
          %p311 = pneg %p65
        $region54: #{actor_critic_forward.1} parent=47 // pred_check_branch
          %313 = sbr.rel (%p311) target = $region56
        $region55: #{actor_critic_forward.1} parent=47 // pred_region
          %315 = dma.done [#allocation5], 1024
        $region56: #{actor_critic_forward.1} parent=47 // pred_fallthru
          _
        // Predicated region
        $region57: #{actor_critic_forward.1} parent=47 // pred_check
          %p316 = pneg %p107
        $region58: #{actor_critic_forward.1} parent=47 // pred_check_branch
          %318 = sbr.rel (%p316) target = $region60
        $region59: #{actor_critic_forward.1} parent=47 // pred_region
          %320 = dma.done [#allocation5], 8192
        $region60: #{actor_critic_forward.1} parent=47 // pred_fallthru
          _
        // Predicated region
        $region61: #{actor_critic_forward.1} parent=47 // pred_check
          %p321 = pneg %p149
        $region62: #{actor_critic_forward.1} parent=47 // pred_check_branch
          %323 = sbr.rel (%p321) target = $region64
        $region63: #{actor_critic_forward.1} parent=47 // pred_region
          %325 = dma.done [#allocation8], 4096
        $region64: #{actor_critic_forward.1} parent=47 // pred_fallthru
          _
        // Predicated region
        $region65: #{actor_critic_forward.1} parent=47 // pred_check
          %p326 = pneg %p170
        $region66: #{actor_critic_forward.1} parent=47 // pred_check_branch
          %328 = sbr.rel (%p326) target = $region68
        $region67: #{actor_critic_forward.1} parent=47 // pred_region
          %330 = dma.done [#allocation8], 16
        $region68: #{actor_critic_forward.1} parent=47 // pred_fallthru
          _
        %s331 = sand.u32 %s31, 1
        %s332 = scalar_lea.sflag [#allocation3], %s331
        %s333 = sand.u32 %s31, 1
        %s334 = smul.addr %s333, 8
        %s335 = scalar_lea.vmem [#allocation2], %s334
        %p336 = pneg %p44
        %p337 = pneg %p41
        %p338 = pneg %p65
        %p339 = pneg %p62
        %p340 = pneg %p86
        %p341 = pneg %p83
        %p342 = pneg %p107
        %p343 = pneg %p104
        %p344 = pneg %p128
        %p345 = pneg %p125
        %p346 = pneg %p149
        %p347 = pneg %p146
        %p348 = pneg %p170
        %p349 = pneg %p167
        %p350 = pneg %p196
        %p351 = pneg %p193
        %p352 = scmp.lt.s32.totalorder %s23, 1
        %s353 = scalar_select %p352, %s23, 1
        %s354 = smul.addr %s353, 8
        %s355 = scalar_lea.vmem %s7, %s354
        %p356 = scmp.lt.s32.totalorder %s23, 1
        %s357 = scalar_select %p356, %s23, 1
        %s358 = smul.addr %s357, 8
        %s359 = scalar_lea.vmem %s7, %s358
        %v360 = vld [vmem:[%s305] sm:$0xff]
        %v361 = vld [vmem:[#allocation4] sm:$0xff]
        %v362 = vld [vmem:[#allocation4 + $0x8] sm:$0xff]
        %v363 = vld [vmem:[#allocation4 + $0x10] sm:$0xff]
        %v364 = vld [vmem:[#allocation4 + $0x18] sm:$0xff]
        %v365 = vld [vmem:[#allocation4 + $0x20] sm:$0xff]
        %v366 = vld [vmem:[#allocation4 + $0x28] sm:$0xff]
        %v367 = vld [vmem:[#allocation4 + $0x30] sm:$0xff]
        %v368 = vld [vmem:[#allocation4 + $0x38] sm:$0xff]
        %v369 = vld [vmem:[%s2] sm:$0x3]
        %v371 = vperm.slane %v369, 0
        %v372 = vperm.slane %v369, 1
        %vm375 = vcmask 261120
        %v377 = vsel %vm375, %v360, 0
        %379 = vmatpush.msra.mxu0 0.0
        %380 = vmatpush.msra.mxu0 0.0
        %381 = vmatpush.msra.mxu0 0.0
        %382 = vmatpush.msra.mxu0 0.0
        %383 = vmatpush.msra.mxu0 0.0
        %384 = vmatpush.msra.mxu0 0.0
        %385 = vmatpush.msra.mxu0 0.0
        %386 = vmatpush.msra.mxu0 0.0
        %387 = vmatpush.msra.mxu0 0.0
        %388 = vmatpush.msra.mxu0 0.0
        %389 = vmatpush.msra.mxu0 0.0
        %390 = vmatpush.msra.mxu0 0.0
        %391 = vmatpush.msra.mxu0 %v367
        %392 = vmatpush.msra.mxu0 %v365
        %393 = vmatpush.msra.mxu0 %v363
        %394 = vmatpush.msra.mxu0 %v361
        %395 = vmatmul.f32.gmra.mxu0 %v377
        %v396 = vpop.f32.mrf.mxu0
        %v397 = vadd.f32 %v371, %v396
        %398 = vdwg.mxu0
        %399 = vmatpush.msra.mxu0 0.0
        %400 = vmatpush.msra.mxu0 0.0
        %401 = vmatpush.msra.mxu0 0.0
        %402 = vmatpush.msra.mxu0 0.0
        %403 = vmatpush.msra.mxu0 0.0
        %404 = vmatpush.msra.mxu0 0.0
        %405 = vmatpush.msra.mxu0 0.0
        %406 = vmatpush.msra.mxu0 0.0
        %407 = vmatpush.msra.mxu0 0.0
        %408 = vmatpush.msra.mxu0 0.0
        %409 = vmatpush.msra.mxu0 0.0
        %410 = vmatpush.msra.mxu0 0.0
        %411 = vmatpush.msra.mxu0 %v368
        %412 = vmatpush.msra.mxu0 %v366
        %413 = vmatpush.msra.mxu0 %v364
        %414 = vmatpush.msra.mxu0 %v362
        %415 = vmatmul.f32.gmra.mxu0 %v377
        %v416 = vpop.f32.mrf.mxu0
        %v417 = vadd.f32 %v372, %v416
        %418 = vdwg.mxu0
        %v419 = vmul.f32 %v397, 0.5
        %v420 = vmul.f32 %v417, 0.5
        %v421 = vmul.f32 %v397, 0.70710677
        %v422 = vmul.f32 %v417, 0.70710677
        %v423 = vmul.f32 %v421, %v421
        %v424 = vmin.f32 16.0, %v423
        %v425 = vmul.f32 %v424, 2.1237322e-06
        %v426 = vadd.f32 %v425, 0.00028619796
        %v427 = vmul.f32 %v424, %v426
        %v428 = vadd.f32 %v427, 0.0036580483
        %v429 = vmul.f32 %v424, %v428
        %v430 = vadd.f32 %v429, 0.05243302
        %v431 = vmul.f32 %v424, %v430
        %v432 = vadd.f32 %v431, 0.18741608
        %v433 = vmul.f32 %v424, %v432
        %v434 = vadd.f32 %v433, 1.1283791
        %v435 = vmul.f32 %v421, %v434
        %v436 = vmul.f32 %v424, 3.8918573e-05
        %v437 = vadd.f32 %v436, 0.001143296
        %v438 = vmul.f32 %v424, %v437
        %v439 = vadd.f32 %v438, 0.014752088
        %v440 = vmul.f32 %v424, %v439
        %v441 = vadd.f32 %v440, 0.112945676
        %v442 = vmul.f32 %v424, %v441
        %v443 = vadd.f32 %v442, 0.4994258
        %v444 = vmul.f32 %v424, %v443
        %v445 = vadd.f32 %v444, 1.0
        %v446 = vrcp.pop %v445
        %v447 = vmul.f32 %v445, %v446
        %v448 = vsub.f32 1.0, %v447
        %v449 = vmul.f32 %v446, %v448
        %v450 = vadd.f32 %v446, %v449
        %vm451 = vweird.f32 %v445
        %vm452 = vweird.f32 %v446
        %vm453 = vmor %vm451, %vm452
        %v454 = vsel %vm453, %v446, %v450
        %v455 = vand.u32 2147483647, %v445
        %vm456 = vcmp.eq.f32.partialorder %v455, 8.507059e+37
        %v457 = vand.u32 %v445, 2147483648
        %v458 = vor.u32 1.1754944e-38, %v457
        %v459 = vsel %vm456, %v458, %v454
        %v460 = vmul.f32 %v435, %v459
        %v461 = vmin.f32 %v460, 1.0
        %v462 = vmax.f32 %v461, -1.0
        %v463 = vmul.f32 %v422, %v422
        %v464 = vmin.f32 16.0, %v463
        %v465 = vmul.f32 %v464, 2.1237322e-06
        %v466 = vadd.f32 %v465, 0.00028619796
        %v467 = vmul.f32 %v464, %v466
        %v468 = vadd.f32 %v467, 0.0036580483
        %v469 = vmul.f32 %v464, %v468
        %v470 = vadd.f32 %v469, 0.05243302
        %v471 = vmul.f32 %v464, %v470
        %v472 = vadd.f32 %v471, 0.18741608
        %v473 = vmul.f32 %v464, %v472
        %v474 = vadd.f32 %v473, 1.1283791
        %v475 = vmul.f32 %v422, %v474
        %v476 = vmul.f32 %v464, 3.8918573e-05
        %v477 = vadd.f32 %v476, 0.001143296
        %v478 = vmul.f32 %v464, %v477
        %v479 = vadd.f32 %v478, 0.014752088
        %v480 = vmul.f32 %v464, %v479
        %v481 = vadd.f32 %v480, 0.112945676
        %v482 = vmul.f32 %v464, %v481
        %v483 = vadd.f32 %v482, 0.4994258
        %v484 = vmul.f32 %v464, %v483
        %v485 = vadd.f32 %v484, 1.0
        %v486 = vrcp.pop %v485
        %v487 = vmul.f32 %v485, %v486
        %v488 = vsub.f32 1.0, %v487
        %v489 = vmul.f32 %v486, %v488
        %v490 = vadd.f32 %v486, %v489
        %vm491 = vweird.f32 %v485
        %vm492 = vweird.f32 %v486
        %vm493 = vmor %vm491, %vm492
        %v494 = vsel %vm493, %v486, %v490
        %v495 = vand.u32 2147483647, %v485
        %vm496 = vcmp.eq.f32.partialorder %v495, 8.507059e+37
        %v497 = vand.u32 %v485, 2147483648
        %v498 = vor.u32 1.1754944e-38, %v497
        %v499 = vsel %vm496, %v498, %v494
        %v500 = vmul.f32 %v475, %v499
        %v501 = vmin.f32 %v500, 1.0
        %v502 = vmax.f32 %v501, -1.0
        %v503 = vadd.f32 %v462, 1.0
        %v504 = vadd.f32 %v502, 1.0
        %v505 = vmul.f32 %v419, %v503
        %v506 = vmul.f32 %v420, %v504
        %v507 = vld [vmem:[#allocation6] sm:$0xff]
        %v508 = vld [vmem:[#allocation6 + $0x8] sm:$0xff]
        %v509 = vld [vmem:[#allocation6 + $0x10] sm:$0xff]
        %v510 = vld [vmem:[#allocation6 + $0x18] sm:$0xff]
        %v511 = vld [vmem:[#allocation6 + $0x20] sm:$0xff]
        %v512 = vld [vmem:[#allocation6 + $0x28] sm:$0xff]
        %v513 = vld [vmem:[#allocation6 + $0x30] sm:$0xff]
        %v514 = vld [vmem:[#allocation6 + $0x38] sm:$0xff]
        %v515 = vld [vmem:[#allocation6 + $0x40] sm:$0xff]
        %v516 = vld [vmem:[#allocation6 + $0x48] sm:$0xff]
        %v517 = vld [vmem:[#allocation6 + $0x50] sm:$0xff]
        %v518 = vld [vmem:[#allocation6 + $0x58] sm:$0xff]
        %v519 = vld [vmem:[#allocation6 + $0x60] sm:$0xff]
        %v520 = vld [vmem:[#allocation6 + $0x68] sm:$0xff]
        %v521 = vld [vmem:[#allocation6 + $0x70] sm:$0xff]
        %v522 = vld [vmem:[#allocation6 + $0x78] sm:$0xff]
        %v523 = vld [vmem:[#allocation6 + $0x80] sm:$0xff]
        %v524 = vld [vmem:[#allocation6 + $0x88] sm:$0xff]
        %v525 = vld [vmem:[#allocation6 + $0x90] sm:$0xff]
        %v526 = vld [vmem:[#allocation6 + $0x98] sm:$0xff]
        %v527 = vld [vmem:[#allocation6 + $0xa0] sm:$0xff]
        %v528 = vld [vmem:[#allocation6 + $0xa8] sm:$0xff]
        %v529 = vld [vmem:[#allocation6 + $0xb0] sm:$0xff]
        %v530 = vld [vmem:[#allocation6 + $0xb8] sm:$0xff]
        %v531 = vld [vmem:[#allocation6 + $0xc0] sm:$0xff]
        %v532 = vld [vmem:[#allocation6 + $0xc8] sm:$0xff]
        %v533 = vld [vmem:[#allocation6 + $0xd0] sm:$0xff]
        %v534 = vld [vmem:[#allocation6 + $0xd8] sm:$0xff]
        %v535 = vld [vmem:[#allocation6 + $0xe0] sm:$0xff]
        %v536 = vld [vmem:[#allocation6 + $0xe8] sm:$0xff]
        %v537 = vld [vmem:[#allocation6 + $0xf0] sm:$0xff]
        %v538 = vld [vmem:[#allocation6 + $0xf8] sm:$0xff]
        %v539 = vld [vmem:[#allocation6 + $0x100] sm:$0xff]
        %v540 = vld [vmem:[#allocation6 + $0x108] sm:$0xff]
        %v541 = vld [vmem:[#allocation6 + $0x110] sm:$0xff]
        %v542 = vld [vmem:[#allocation6 + $0x118] sm:$0xff]
        %v543 = vld [vmem:[#allocation6 + $0x120] sm:$0xff]
        %v544 = vld [vmem:[#allocation6 + $0x128] sm:$0xff]
        %v545 = vld [vmem:[#allocation6 + $0x130] sm:$0xff]
        %v546 = vld [vmem:[#allocation6 + $0x138] sm:$0xff]
        %v547 = vld [vmem:[#allocation6 + $0x140] sm:$0xff]
        %v548 = vld [vmem:[#allocation6 + $0x148] sm:$0xff]
        %v549 = vld [vmem:[#allocation6 + $0x150] sm:$0xff]
        %v550 = vld [vmem:[#allocation6 + $0x158] sm:$0xff]
        %v551 = vld [vmem:[#allocation6 + $0x160] sm:$0xff]
        %v552 = vld [vmem:[#allocation6 + $0x168] sm:$0xff]
        %v553 = vld [vmem:[#allocation6 + $0x170] sm:$0xff]
        %v554 = vld [vmem:[#allocation6 + $0x178] sm:$0xff]
        %v555 = vld [vmem:[#allocation6 + $0x180] sm:$0xff]
        %v556 = vld [vmem:[#allocation6 + $0x188] sm:$0xff]
        %v557 = vld [vmem:[#allocation6 + $0x190] sm:$0xff]
        %v558 = vld [vmem:[#allocation6 + $0x198] sm:$0xff]
        %v559 = vld [vmem:[#allocation6 + $0x1a0] sm:$0xff]
        %v560 = vld [vmem:[#allocation6 + $0x1a8] sm:$0xff]
        %v561 = vld [vmem:[#allocation6 + $0x1b0] sm:$0xff]
        %v562 = vld [vmem:[#allocation6 + $0x1b8] sm:$0xff]
        %v563 = vld [vmem:[#allocation6 + $0x1c0] sm:$0xff]
        %v564 = vld [vmem:[#allocation6 + $0x1c8] sm:$0xff]
        %v565 = vld [vmem:[#allocation6 + $0x1d0] sm:$0xff]
        %v566 = vld [vmem:[#allocation6 + $0x1d8] sm:$0xff]
        %v567 = vld [vmem:[#allocation6 + $0x1e0] sm:$0xff]
        %v568 = vld [vmem:[#allocation6 + $0x1e8] sm:$0xff]
        %v569 = vld [vmem:[#allocation6 + $0x1f0] sm:$0xff]
        %v570 = vld [vmem:[#allocation6 + $0x1f8] sm:$0xff]
        %v571 = vld [vmem:[%s4] sm:$0x3]
        %v573 = vperm.slane %v571, 0
        %v574 = vperm.slane %v571, 1
        %577 = vmatpush.msra.mxu0 %v537
        %578 = vmatpush.msra.mxu0 %v535
        %579 = vmatpush.msra.mxu0 %v533
        %580 = vmatpush.msra.mxu0 %v531
        %581 = vmatpush.msra.mxu0 %v529
        %582 = vmatpush.msra.mxu0 %v527
        %583 = vmatpush.msra.mxu0 %v525
        %584 = vmatpush.msra.mxu0 %v523
        %585 = vmatpush.msra.mxu0 %v521
        %586 = vmatpush.msra.mxu0 %v519
        %587 = vmatpush.msra.mxu0 %v517
        %588 = vmatpush.msra.mxu0 %v515
        %589 = vmatpush.msra.mxu0 %v513
        %590 = vmatpush.msra.mxu0 %v511
        %591 = vmatpush.msra.mxu0 %v509
        %592 = vmatpush.msra.mxu0 %v507
        %593 = vmatmul.f32.gmra.mxu0 %v505
        %v594 = vpop.f32.mrf.mxu0
        %v595 = vadd.f32 %v573, %v594
        %596 = vdwg.mxu0
        %597 = vmatpush.msra.mxu0 %v569
        %598 = vmatpush.msra.mxu0 %v567
        %599 = vmatpush.msra.mxu0 %v565
        %600 = vmatpush.msra.mxu0 %v563
        %601 = vmatpush.msra.mxu0 %v561
        %602 = vmatpush.msra.mxu0 %v559
        %603 = vmatpush.msra.mxu0 %v557
        %604 = vmatpush.msra.mxu0 %v555
        %605 = vmatpush.msra.mxu0 %v553
        %606 = vmatpush.msra.mxu0 %v551
        %607 = vmatpush.msra.mxu0 %v549
        %608 = vmatpush.msra.mxu0 %v547
        %609 = vmatpush.msra.mxu0 %v545
        %610 = vmatpush.msra.mxu0 %v543
        %611 = vmatpush.msra.mxu0 %v541
        %612 = vmatpush.msra.mxu0 %v539
        %613 = vmatmul.f32.gmra.mxu0 %v506
        %v614 = vpop.f32.mrf.mxu0
        %v615 = vadd.f32 %v595, %v614
        %616 = vdwg.mxu0
        %617 = vmatpush.msra.mxu0 %v538
        %618 = vmatpush.msra.mxu0 %v536
        %619 = vmatpush.msra.mxu0 %v534
        %620 = vmatpush.msra.mxu0 %v532
        %621 = vmatpush.msra.mxu0 %v530
        %622 = vmatpush.msra.mxu0 %v528
        %623 = vmatpush.msra.mxu0 %v526
        %624 = vmatpush.msra.mxu0 %v524
        %625 = vmatpush.msra.mxu0 %v522
        %626 = vmatpush.msra.mxu0 %v520
        %627 = vmatpush.msra.mxu0 %v518
        %628 = vmatpush.msra.mxu0 %v516
        %629 = vmatpush.msra.mxu0 %v514
        %630 = vmatpush.msra.mxu0 %v512
        %631 = vmatpush.msra.mxu0 %v510
        %632 = vmatpush.msra.mxu0 %v508
        %633 = vmatmul.f32.gmra.mxu0 %v505
        %v634 = vpop.f32.mrf.mxu0
        %v635 = vadd.f32 %v574, %v634
        %636 = vdwg.mxu0
        %637 = vmatpush.msra.mxu0 %v570
        %638 = vmatpush.msra.mxu0 %v568
        %639 = vmatpush.msra.mxu0 %v566
        %640 = vmatpush.msra.mxu0 %v564
        %641 = vmatpush.msra.mxu0 %v562
        %642 = vmatpush.msra.mxu0 %v560
        %643 = vmatpush.msra.mxu0 %v558
        %644 = vmatpush.msra.mxu0 %v556
        %645 = vmatpush.msra.mxu0 %v554
        %646 = vmatpush.msra.mxu0 %v552
        %647 = vmatpush.msra.mxu0 %v550
        %648 = vmatpush.msra.mxu0 %v548
        %649 = vmatpush.msra.mxu0 %v546
        %650 = vmatpush.msra.mxu0 %v544
        %651 = vmatpush.msra.mxu0 %v542
        %652 = vmatpush.msra.mxu0 %v540
        %653 = vmatmul.f32.gmra.mxu0 %v506
        %v654 = vpop.f32.mrf.mxu0
        %v655 = vadd.f32 %v635, %v654
        %656 = vdwg.mxu0
        %v657 = vmul.f32 %v615, 0.5
        %v658 = vmul.f32 %v655, 0.5
        %v659 = vmul.f32 %v615, 0.70710677
        %v660 = vmul.f32 %v655, 0.70710677
        %v661 = vmul.f32 %v659, %v659
        %v662 = vmin.f32 16.0, %v661
        %v663 = vmul.f32 %v662, 2.1237322e-06
        %v664 = vadd.f32 %v663, 0.00028619796
        %v665 = vmul.f32 %v662, %v664
        %v666 = vadd.f32 %v665, 0.0036580483
        %v667 = vmul.f32 %v662, %v666
        %v668 = vadd.f32 %v667, 0.05243302
        %v669 = vmul.f32 %v662, %v668
        %v670 = vadd.f32 %v669, 0.18741608
        %v671 = vmul.f32 %v662, %v670
        %v672 = vadd.f32 %v671, 1.1283791
        %v673 = vmul.f32 %v659, %v672
        %v674 = vmul.f32 %v662, 3.8918573e-05
        %v675 = vadd.f32 %v674, 0.001143296
        %v676 = vmul.f32 %v662, %v675
        %v677 = vadd.f32 %v676, 0.014752088
        %v678 = vmul.f32 %v662, %v677
        %v679 = vadd.f32 %v678, 0.112945676
        %v680 = vmul.f32 %v662, %v679
        %v681 = vadd.f32 %v680, 0.4994258
        %v682 = vmul.f32 %v662, %v681
        %v683 = vadd.f32 %v682, 1.0
        %v684 = vrcp.pop %v683
        %v685 = vmul.f32 %v683, %v684
        %v686 = vsub.f32 1.0, %v685
        %v687 = vmul.f32 %v684, %v686
        %v688 = vadd.f32 %v684, %v687
        %vm689 = vweird.f32 %v683
        %vm690 = vweird.f32 %v684
        %vm691 = vmor %vm689, %vm690
        %v692 = vsel %vm691, %v684, %v688
        %v693 = vand.u32 2147483647, %v683
        %vm694 = vcmp.eq.f32.partialorder %v693, 8.507059e+37
        %v695 = vand.u32 %v683, 2147483648
        %v696 = vor.u32 1.1754944e-38, %v695
        %v697 = vsel %vm694, %v696, %v692
        %v698 = vmul.f32 %v673, %v697
        %v699 = vmin.f32 %v698, 1.0
        %v700 = vmax.f32 %v699, -1.0
        %v701 = vmul.f32 %v660, %v660
        %v702 = vmin.f32 16.0, %v701
        %v703 = vmul.f32 %v702, 2.1237322e-06
        %v704 = vadd.f32 %v703, 0.00028619796
        %v705 = vmul.f32 %v702, %v704
        %v706 = vadd.f32 %v705, 0.0036580483
        %v707 = vmul.f32 %v702, %v706
        %v708 = vadd.f32 %v707, 0.05243302
        %v709 = vmul.f32 %v702, %v708
        %v710 = vadd.f32 %v709, 0.18741608
        %v711 = vmul.f32 %v702, %v710
        %v712 = vadd.f32 %v711, 1.1283791
        %v713 = vmul.f32 %v660, %v712
        %v714 = vmul.f32 %v702, 3.8918573e-05
        %v715 = vadd.f32 %v714, 0.001143296
        %v716 = vmul.f32 %v702, %v715
        %v717 = vadd.f32 %v716, 0.014752088
        %v718 = vmul.f32 %v702, %v717
        %v719 = vadd.f32 %v718, 0.112945676
        %v720 = vmul.f32 %v702, %v719
        %v721 = vadd.f32 %v720, 0.4994258
        %v722 = vmul.f32 %v702, %v721
        %v723 = vadd.f32 %v722, 1.0
        %v724 = vrcp.pop %v723
        %v725 = vmul.f32 %v723, %v724
        %v726 = vsub.f32 1.0, %v725
        %v727 = vmul.f32 %v724, %v726
        %v728 = vadd.f32 %v724, %v727
        %vm729 = vweird.f32 %v723
        %vm730 = vweird.f32 %v724
        %vm731 = vmor %vm729, %vm730
        %v732 = vsel %vm731, %v724, %v728
        %v733 = vand.u32 2147483647, %v723
        %vm734 = vcmp.eq.f32.partialorder %v733, 8.507059e+37
        %v735 = vand.u32 %v723, 2147483648
        %v736 = vor.u32 1.1754944e-38, %v735
        %v737 = vsel %vm734, %v736, %v732
        %v738 = vmul.f32 %v713, %v737
        %v739 = vmin.f32 %v738, 1.0
        %v740 = vmax.f32 %v739, -1.0
        %v741 = vadd.f32 %v700, 1.0
        %v742 = vadd.f32 %v740, 1.0
        %v743 = vmul.f32 %v657, %v741
        %v744 = vmul.f32 %v658, %v742
        %v745 = vld [vmem:[#allocation7] sm:$0xff]
        %v746 = vld [vmem:[#allocation7 + $0x8] sm:$0xff]
        %v747 = vld [vmem:[#allocation7 + $0x10] sm:$0xff]
        %v748 = vld [vmem:[#allocation7 + $0x18] sm:$0xff]
        %v749 = vld [vmem:[#allocation7 + $0x20] sm:$0xff]
        %v750 = vld [vmem:[#allocation7 + $0x28] sm:$0xff]
        %v751 = vld [vmem:[#allocation7 + $0x30] sm:$0xff]
        %v752 = vld [vmem:[#allocation7 + $0x38] sm:$0xff]
        %v753 = vld [vmem:[#allocation7 + $0x40] sm:$0xff]
        %v754 = vld [vmem:[#allocation7 + $0x48] sm:$0xff]
        %v755 = vld [vmem:[#allocation7 + $0x50] sm:$0xff]
        %v756 = vld [vmem:[#allocation7 + $0x58] sm:$0xff]
        %v757 = vld [vmem:[#allocation7 + $0x60] sm:$0xff]
        %v758 = vld [vmem:[#allocation7 + $0x68] sm:$0xff]
        %v759 = vld [vmem:[#allocation7 + $0x70] sm:$0xff]
        %v760 = vld [vmem:[#allocation7 + $0x78] sm:$0xff]
        %v761 = vld [vmem:[#allocation7 + $0x80] sm:$0xff]
        %v762 = vld [vmem:[#allocation7 + $0x88] sm:$0xff]
        %v763 = vld [vmem:[#allocation7 + $0x90] sm:$0xff]
        %v764 = vld [vmem:[#allocation7 + $0x98] sm:$0xff]
        %v765 = vld [vmem:[#allocation7 + $0xa0] sm:$0xff]
        %v766 = vld [vmem:[#allocation7 + $0xa8] sm:$0xff]
        %v767 = vld [vmem:[#allocation7 + $0xb0] sm:$0xff]
        %v768 = vld [vmem:[#allocation7 + $0xb8] sm:$0xff]
        %v769 = vld [vmem:[#allocation7 + $0xc0] sm:$0xff]
        %v770 = vld [vmem:[#allocation7 + $0xc8] sm:$0xff]
        %v771 = vld [vmem:[#allocation7 + $0xd0] sm:$0xff]
        %v772 = vld [vmem:[#allocation7 + $0xd8] sm:$0xff]
        %v773 = vld [vmem:[#allocation7 + $0xe0] sm:$0xff]
        %v774 = vld [vmem:[#allocation7 + $0xe8] sm:$0xff]
        %v775 = vld [vmem:[#allocation7 + $0xf0] sm:$0xff]
        %v776 = vld [vmem:[#allocation7 + $0xf8] sm:$0xff]
        %v777 = vld [vmem:[#allocation9] sm:$0x1]
        %v779 = vperm.slane %v777, 0
        %781 = vmatpush.msra.mxu0 %v760
        %782 = vmatpush.msra.mxu0 %v759
        %783 = vmatpush.msra.mxu0 %v758
        %784 = vmatpush.msra.mxu0 %v757
        %785 = vmatpush.msra.mxu0 %v756
        %786 = vmatpush.msra.mxu0 %v755
        %787 = vmatpush.msra.mxu0 %v754
        %788 = vmatpush.msra.mxu0 %v753
        %789 = vmatpush.msra.mxu0 %v752
        %790 = vmatpush.msra.mxu0 %v751
        %791 = vmatpush.msra.mxu0 %v750
        %792 = vmatpush.msra.mxu0 %v749
        %793 = vmatpush.msra.mxu0 %v748
        %794 = vmatpush.msra.mxu0 %v747
        %795 = vmatpush.msra.mxu0 %v746
        %796 = vmatpush.msra.mxu0 %v745
        %797 = vmatmul.f32.gmra.mxu0 %v743
        %v798 = vpop.f32.mrf.mxu0
        %v799 = vadd.f32 %v779, %v798
        %800 = vdwg.mxu0
        %801 = vmatpush.msra.mxu0 %v776
        %802 = vmatpush.msra.mxu0 %v775
        %803 = vmatpush.msra.mxu0 %v774
        %804 = vmatpush.msra.mxu0 %v773
        %805 = vmatpush.msra.mxu0 %v772
        %806 = vmatpush.msra.mxu0 %v771
        %807 = vmatpush.msra.mxu0 %v770
        %808 = vmatpush.msra.mxu0 %v769
        %809 = vmatpush.msra.mxu0 %v768
        %810 = vmatpush.msra.mxu0 %v767
        %811 = vmatpush.msra.mxu0 %v766
        %812 = vmatpush.msra.mxu0 %v765
        %813 = vmatpush.msra.mxu0 %v764
        %814 = vmatpush.msra.mxu0 %v763
        %815 = vmatpush.msra.mxu0 %v762
        %816 = vmatpush.msra.mxu0 %v761
        %817 = vmatmul.f32.gmra.mxu0 %v744
        %v818 = vpop.f32.mrf.mxu0
        %v819 = vadd.f32 %v799, %v818
        %820 = vdwg.mxu0
        %821 = vst [vmem:[%s359] sm:$0xff] %v819
        %p822 = scmp.lt.s32.totalorder %s23, 1
        %s823 = scalar_select %p822, %s23, 1
        %s824 = smul.addr %s823, 8
        %s825 = scalar_lea.vmem %s7, %s824
        // Predicated region
        $region69: #{actor_critic_forward.1} parent=47 // pred_check
          %p826 = pneg %p193
        $region70: #{actor_critic_forward.1} parent=47 // pred_check_branch
          %828 = sbr.rel (%p826) target = $region72
        $region71: #{actor_critic_forward.1} parent=47 // pred_region
          _
        $region72: #{actor_critic_forward.1} parent=47 // pred_fallthru
          _
      $region48: #{actor_critic_forward.1} parent=5 // pred_fallthru
        _
      %p829 = scmp.le.s32.totalorder 2, %s18
      // Predicated region
      $region73: #{actor_critic_forward.1} parent=5 // pred_check
        %p830 = pneg %p829
      $region74: #{actor_critic_forward.1} parent=5 // pred_check_branch
        %832 = sbr.rel (%p830) target = $region76
      $region75: #{actor_critic_forward.1} parent=5 // pred_region
        %s833 = ssub.s32 %s18, 2
        // Predicated region
        $region77: #{actor_critic_forward.1} parent=75 // pred_check
          %p834 = pneg %p199
        $region78: #{actor_critic_forward.1} parent=75 // pred_check_branch
          %836 = sbr.rel (%p834) target = $region80
        $region79: #{actor_critic_forward.1} parent=75 // pred_region
          %p837 = scmp.lt.s32.totalorder %s24, 1
          %s838 = scalar_select %p837, %s24, 1
          %s839 = smul.addr %s838, 8
          %s840 = scalar_lea.vmem %s7, %s839
        $region80: #{actor_critic_forward.1} parent=75 // pred_fallthru
          _
      $region76: #{actor_critic_forward.1} parent=5 // pred_fallthru
        _
    $region6: #{actor_critic_forward.1} parent=1 // loop_footer
      %s22 = sadd.s32 1, %s18
    $region7: #{actor_critic_forward.1} parent=1 // loop_footer_branch
      %17 = sbr.rel target = $region3
    $region8: #{actor_critic_forward.1} parent=1 // loop_exit
      _
    %841 = vsyncpa [#allocation3], 1
    %s842 = scalar_lea.sflag [#allocation3], 1
    %843 = vsyncpa %s842, 1
    %844 = vsyncpa [#allocation5], 1
    %845 = vsyncpa [#allocation8], 1

</llo_original>
